<compile_context>
chip_gen: v5e
topology: v5e:2x2
jax: 0.10.0
libtpu: 0.0.40
codegen_flags: <defaults>
</compile_context>

<pallas_src>
import math

import jax
import jax.numpy as jnp
from jax.experimental import pallas as pl
from jax.experimental.pallas import tpu as pltpu


# ---------------------------------------------------------------------------
# Kernel
# ---------------------------------------------------------------------------
def _pe_kernel(x_ref, pe_ref, mask_ref, o_ref):
    # x_ref / o_ref: (TB, TS, D)
    # pe_ref:        (TS, D)           positional table tile, shared over batch
    # mask_ref:      (TB, TS, 1 or D)  int8; nonzero -> zero that d_model row
    y = x_ref[...] + pe_ref[...][None, :, :]                  # VPU elementwise add
    o_ref[...] = jnp.where(mask_ref[...] != 0, jnp.zeros_like(y), y)
    # TODO(synk): training-mode dropout (p=0.1) omitted -- inference-only kernel
    # (torch RNG stream cannot be reproduced anyway).


# ---------------------------------------------------------------------------
# PE table (matches the torch buffer, without the leading unsqueezed batch dim)
# ---------------------------------------------------------------------------
def make_positional_encoding_table(max_len: int, d_model: int) -> jnp.ndarray:
    assert d_model % 2 == 0, "PositionalEncoding_fix assumes an even d_model"
    position = jnp.arange(0, max_len, dtype=jnp.float32)[:, None]           # (L, 1)
    div_term = jnp.exp(
        jnp.arange(0, d_model, 2, dtype=jnp.float32)
        * (-(math.log(10000.0) / d_model))
    )                                                                        # (D/2,)
    angles = position * div_term[None, :]                                    # (L, D/2)
    pe = jnp.zeros((max_len, d_model), dtype=jnp.float32)
    pe = pe.at[:, 0::2].set(jnp.sin(angles))
    pe = pe.at[:, 1::2].set(jnp.cos(angles))
    return pe


# ---------------------------------------------------------------------------
# Tiling helpers
# ---------------------------------------------------------------------------
def _round_up(x: int, m: int) -> int:
    return ((x + m - 1) // m) * m


def _vmem_budget_bytes() -> int:
    """Conservative double-buffered working-set budget, portable across
    v5e (16 MiB scoped default), v6e (32 MiB) and v7x (64 MiB physical)."""
    try:
        cap = pltpu.get_tpu_info().vmem_capacity_bytes
    except Exception:
        cap = 64 << 20
    return max(4 << 20, min(12 << 20, cap // 8))


def _choose_tiles(B: int, S: int, D: int, itemsize: int,
                  mask_lanes: int, budget: int):
    """Pick (TB, TS): TB a divisor of B (prefer the whole batch), TS either the
    full S or a multiple of 8, such that the double-buffered working set
    (x + out + pe + lane-padded int8 mask) fits `budget`."""
    mask_lane_pad = _round_up(mask_lanes, 128)

    def working_set(tb, ts):
        x_blk = tb * ts * D * itemsize                       # x tile
        pe_blk = ts * D * itemsize                           # pe tile (b-invariant)
        m_blk = tb * _round_up(ts, 32) * mask_lane_pad       # int8 mask, VMEM-padded
        return 2 * (2 * x_blk + pe_blk + m_blk)              # double buffered

    for tb in (d for d in range(B, 0, -1) if B % d == 0):
        if working_set(tb, S) <= budget:                     # whole sequence fits
            return tb, S
        if S >= 8:
            per_row = 2 * (2 * tb * D * itemsize + D * itemsize + tb * mask_lane_pad)
            ts = min((S // 8) * 8, max(8, (budget // max(per_row, 1)) // 8 * 8))
            if working_set(tb, ts) <= budget:
                return tb, ts
    return 1, min(S, 8)                                      # minimal fallback


# ---------------------------------------------------------------------------
# pallas_call launcher (shared by the direct and lane-folded paths)
# ---------------------------------------------------------------------------
def _launch(x3: jnp.ndarray, pe2: jnp.ndarray, mask3: jnp.ndarray) -> jnp.ndarray:
    B, S, D = x3.shape
    ml = mask3.shape[-1]
    itemsize = jnp.dtype(x3.dtype).itemsize

    TB, TS = _choose_tiles(B, S, D, itemsize, ml, _vmem_budget_bytes())
    n_s = pl.cdiv(S, TS)          # ragged last block handled by Pallas
    n_b = B // TB                 # TB always divides B

    bytes_accessed = 2 * B * S * D * itemsize + S * D * itemsize + B * S * ml

    return pl.pallas_call(
        _pe_kernel,
        out_shape=jax.ShapeDtypeStruct((B, S, D), x3.dtype),
        grid=(n_s, n_b),          # batch innermost -> pe block index constant -> DMA skipped
        in_specs=[
            pl.BlockSpec((TB, TS, D), lambda s, b: (b, s, 0)),     # x tile
            pl.BlockSpec((TS, D),     lambda s, b: (s, 0)),        # pe tile (b-invariant)
            pl.BlockSpec((TB, TS, ml), lambda s, b: (b, s, 0)),    # int8 mask tile
        ],
        out_specs=pl.BlockSpec((TB, TS, D), lambda s, b: (b, s, 0)),
        compiler_params=pltpu.CompilerParams(
            dimension_semantics=("parallel", "parallel"),
        ),
        cost_estimate=pl.CostEstimate(
            flops=2 * B * S * D,              # add + select
            transcendentals=0,
            bytes_accessed=int(bytes_accessed),
        ),
    )(x3, pe2, mask3)


# ---------------------------------------------------------------------------
# Public wrapper
# ---------------------------------------------------------------------------
def positional_encoding_fix(x: jnp.ndarray,
                            pe: jnp.ndarray,
                            src_mask: jnp.ndarray) -> jnp.ndarray:
    """x: (B, S, D); pe: (max_len, D); src_mask: (B, S) bool."""
    B, S, D = x.shape
    assert pe.shape[0] >= S and pe.shape[1] == D

    # NOTE: pe is cast to x.dtype (bf16 x => bf16 add); torch adds an fp32 buffer.
    pe_s = pe[:S].astype(x.dtype)

    # Lane-density guard: fold k = 128//D sequence positions into the lane dim
    # so output stores are full-lane (unmasked) when D < 128.
    if D < 128 and 128 % D == 0 and S % (128 // D) == 0:
        k = 128 // D
        x3 = x.reshape(B, S // k, k * D)
        pe3 = pe_s.reshape(S // k, k * D)
        m3 = jnp.broadcast_to(
            src_mask.astype(jnp.int8)[:, :, None], (B, S, D)
        ).reshape(B, S // k, k * D)
        return _launch(x3, pe3, m3).reshape(B, S, D)

    # Direct path (production D, multiple of 128): tiny (B, S, 1) int8 mask.
    m3 = src_mask.astype(jnp.int8)[:, :, None]
    return _launch(x, pe_s, m3)


def _reference(x, pe, src_mask):
    y = x + pe[None, : x.shape[1]]
    return jnp.where(src_mask[:, :, None], 0.0, y)


if __name__ == "__main__":
    MAX_LEN = 16
    key = jax.random.PRNGKey(0)
    kx1, km1, kx2, km2 = jax.random.split(key, 4)

    # --- small demo shape (D=32 -> lane-folded path) ---
    B, S, D = 2, 8, 32
    x = jax.random.normal(kx1, (B, S, D), dtype=jnp.float32)
    src_mask = jax.random.bernoulli(km1, p=0.25, shape=(B, S))
    pe = make_positional_encoding_table(MAX_LEN, D)
    y = jax.block_until_ready(positional_encoding_fix(x, pe, src_mask))
    assert y.shape == (B, S, D)
    assert jnp.allclose(y, _reference(x, pe, src_mask), atol=1e-5, rtol=1e-5)

    # --- production-like lane width (D=128 -> direct path) ---
    B2, S2, D2 = 2, 8, 128
    x2 = jax.random.normal(kx2, (B2, S2, D2), dtype=jnp.float32)
    src_mask2 = jax.random.bernoulli(km2, p=0.25, shape=(B2, S2))
    pe2 = make_positional_encoding_table(MAX_LEN, D2)
    y2 = jax.block_until_ready(positional_encoding_fix(x2, pe2, src_mask2))
    assert y2.shape == (B2, S2, D2)
    assert jnp.allclose(y2, _reference(x2, pe2, src_mask2), atol=1e-5, rtol=1e-5)

    print("KERNEL_OK")
</pallas_src>

<mosaic_0001>
module attributes {stable_mosaic.version = 11 : i64} {
  func.func @_pe_kernel(%arg0: i32, %arg1: i32, %arg2: memref<2x2x128xf32, #tpu.memory_space<vmem>>, %arg3: memref<2x128xf32, #tpu.memory_space<vmem>>, %arg4: memref<2x2x128xi8, #tpu.memory_space<vmem>>, %arg5: memref<2x2x128xf32, #tpu.memory_space<vmem>>) attributes {dimension_semantics = [#tpu.dimension_semantics<parallel>, #tpu.dimension_semantics<parallel>], iteration_bounds = array<i64: 1, 1>, scalar_prefetch = 0 : i64, scratch_operands = 0 : i64, tpu.core_type = #tpu.core_type<tc>, window_params = [{transform_indices = @transform_0, window_bounds = array<i64: 2, 2, 128>}, {transform_indices = @transform_1, window_bounds = array<i64: 2, 128>}, {transform_indices = @transform_2, window_bounds = array<i64: 2, 2, 128>}, {transform_indices = @transform_3, window_bounds = array<i64: 2, 2, 128>}]} {
    %c0 = arith.constant 0 : index
    %c0_0 = arith.constant 0 : index
    %c0_1 = arith.constant 0 : index
    %0 = vector.load %arg2[%c0, %c0_0, %c0_1] : memref<2x2x128xf32, #tpu.memory_space<vmem>>, vector<2x2x128xf32>
    %c0_2 = arith.constant 0 : index
    %c0_3 = arith.constant 0 : index
    %1 = vector.load %arg3[%c0_2, %c0_3] : memref<2x128xf32, #tpu.memory_space<vmem>>, vector<2x128xf32>
    %2 = vector.shape_cast %1 : vector<2x128xf32> to vector<1x2x128xf32>
    %3 = vector.broadcast %2 : vector<1x2x128xf32> to vector<2x2x128xf32>
    %4 = arith.addf %0, %3 : vector<2x2x128xf32>
    %c0_4 = arith.constant 0 : index
    %c0_5 = arith.constant 0 : index
    %c0_6 = arith.constant 0 : index
    %5 = vector.load %arg4[%c0_4, %c0_5, %c0_6] : memref<2x2x128xi8, #tpu.memory_space<vmem>>, vector<2x2x128xi8>
    %c0_i8 = arith.constant 0 : i8
    %6 = vector.broadcast %c0_i8 : i8 to vector<2x2x128xi8>
    %7 = arith.cmpi ne, %5, %6 : vector<2x2x128xi8>
    %cst = arith.constant 0.000000e+00 : f32
    %8 = vector.broadcast %cst : f32 to vector<2x2x128xf32>
    %9 = arith.select %7, %8, %4 : vector<2x2x128xi1>, vector<2x2x128xf32>
    %c0_7 = arith.constant 0 : index
    %c0_8 = arith.constant 0 : index
    %c0_9 = arith.constant 0 : index
    %10 = vector.load %arg5[%c0_7, %c0_8, %c0_9] : memref<2x2x128xf32, #tpu.memory_space<vmem>>, vector<2x2x128xf32>
    tpu.vector_store %arg5[%c0_7, %c0_8, %c0_9], %9 {strides = array<i32>} : memref<2x2x128xf32, #tpu.memory_space<vmem>>, vector<2x2x128xf32>,
    return
  }
  func.func @transform_0(%arg0: i32, %arg1: i32) -> (i32, i32, i32) {
    %c0_i32 = arith.constant 0 : i32
    %c0_i32_0 = arith.constant 0 : i32
    return %arg1, %arg0, %c0_i32 : i32, i32, i32
  }
  func.func @transform_1(%arg0: i32, %arg1: i32) -> (i32, i32) {
    %c0_i32 = arith.constant 0 : i32
    %c0_i32_0 = arith.constant 0 : i32
    return %arg0, %c0_i32 : i32, i32
  }
  func.func @transform_2(%arg0: i32, %arg1: i32) -> (i32, i32, i32) {
    %c0_i32 = arith.constant 0 : i32
    %c0_i32_0 = arith.constant 0 : i32
    return %arg1, %arg0, %c0_i32 : i32, i32, i32
  }
  func.func @transform_3(%arg0: i32, %arg1: i32) -> (i32, i32, i32) {
    %c0_i32 = arith.constant 0 : i32
    %c0_i32_0 = arith.constant 0 : i32
    return %arg1, %arg0, %c0_i32 : i32, i32, i32
  }
}

</mosaic_0001>

<llo_original>
// kernel: tpu_custom_call.1
$region0: #{tpu_custom_call.1}
  #allocation0 [shape = 'u32[]', space=smem, size = 0x4, offset = 0x4, fixed_abs, tag = 'smem constant byte address 0x4 - core index']
  #allocation1 [shape = 'u32[72,128]{1,0:T(1,128)}', space=vmem, size = 0x9000, scoped, tag = 'internal scratch']
  %s0 = inlined_call_operand.hbm [shape: f32[2,2,128], index: 0, kind: input, shape index: {}]
  %s1 = inlined_call_operand.hbm [shape: f32[2,128], index: 1, kind: input, shape index: {}]
  %s2 = inlined_call_operand.hbm [shape: s8[2,2,128], index: 2, kind: input, shape index: {}]
  %s3 = inlined_call_operand.hbm [shape: f32[2,2,128], index: 3, kind: output, shape index: {}]
  %s4 = sld [smem:[#allocation0]]
  $region34: #{tpu_custom_call.1} parent=0
    _
  %s6 = ssub.s32 1, %s4
  %s7 = scalar_select 0, %s6, %s4
  $region1: #{tpu_custom_call.1} parent=0
    #allocation2 [shape = 'u8[2048]{0}', space=vmem, size = 0x800, scoped, tag = 'input window, operand 0, single buffered']
    #allocation3 [shape = 's32[1]{0}', space=sflag, size = 0x4, scoped, tag = 'scoped memory for tpu_custom_call.1']
    #allocation4 [shape = 's32[1]{0}', space=sflag, size = 0x4, scoped, tag = 'scoped memory for tpu_custom_call.1']
    #allocation5 [shape = 'u8[1024]{0}', space=vmem, size = 0x400, scoped, tag = 'input window, operand 1, single buffered']
    #allocation6 [shape = 's32[1]{0}', space=sflag, size = 0x4, scoped, tag = 'scoped memory for tpu_custom_call.1']
    #allocation7 [shape = 'u8[1024]{0}', space=vmem, size = 0x400, scoped, tag = 'input window, operand 2, single buffered']
    #allocation8 [shape = 'u8[2048]{0}', space=vmem, size = 0x800, scoped, tag = 'output window, operand 0, single buffered']
    %8 = vsyncpa [#allocation3], 0
    %9 = vsyncpa [#allocation6], 0
    %10 = vsyncpa [#allocation4], 0
    // Predicated region
    $region2: #{tpu_custom_call.1} parent=1 // pred_check
      _
    $region3: #{tpu_custom_call.1} parent=1 // pred_check_branch
      %12 = sbr.rel (0) target = $region5
    $region4: #{tpu_custom_call.1} parent=1 // pred_region
      %14 = vsyncadd [#allocation3], 0
      %s15 = sshll.u32 %s0, 4
      %s16 = int_to_ptr.hbm [resolvable:$true] %s15
      %s17 = sshll.u32 [#allocation2], 4
      %s18 = int_to_ptr.vmem [resolvable:$true] %s17
      %23 = dma.hbm_to_vmem [thread:$0]  %s16, 64, %s18, [#allocation3], 32, 32, 2
    $region5: #{tpu_custom_call.1} parent=1 // pred_fallthru
      _
    // Predicated region
    $region6: #{tpu_custom_call.1} parent=1 // pred_check
      _
    $region7: #{tpu_custom_call.1} parent=1 // pred_check_branch
      %25 = sbr.rel (0) target = $region9
    $region8: #{tpu_custom_call.1} parent=1 // pred_region
      %27 = vsyncadd [#allocation6], 0
      %s29 = sshll.u32 %s1, 4
      %s30 = int_to_ptr.hbm [resolvable:$true] %s29
      %s31 = sshll.u32 [#allocation5], 4
      %s32 = int_to_ptr.vmem [resolvable:$true] %s31
      %34 = dma.hbm_to_vmem [thread:$0]  %s30, 32, %s32, [#allocation6]
    $region9: #{tpu_custom_call.1} parent=1 // pred_fallthru
      _
    // Predicated region
    $region10: #{tpu_custom_call.1} parent=1 // pred_check
      _
    $region11: #{tpu_custom_call.1} parent=1 // pred_check_branch
      %36 = sbr.rel (0) target = $region13
    $region12: #{tpu_custom_call.1} parent=1 // pred_region
      %38 = vsyncadd [#allocation6], 0
      %s39 = sshll.u32 %s2, 4
      %s40 = int_to_ptr.hbm [resolvable:$true] %s39
      %s41 = sshll.u32 [#allocation7], 4
      %s42 = int_to_ptr.vmem [resolvable:$true] %s41
      %47 = dma.hbm_to_vmem [thread:$0]  %s40, 32, %s42, [#allocation6], 16, 16, 1
    $region13: #{tpu_custom_call.1} parent=1 // pred_fallthru
      _
    // Predicated region
    $region14: #{tpu_custom_call.1} parent=1 // pred_check
      _
    $region15: #{tpu_custom_call.1} parent=1 // pred_check_branch
      %49 = sbr.rel (0) target = $region17
    $region16: #{tpu_custom_call.1} parent=1 // pred_region
      %51 = dma.done [#allocation3], 64
    $region17: #{tpu_custom_call.1} parent=1 // pred_fallthru
      _
    // Predicated region
    $region18: #{tpu_custom_call.1} parent=1 // pred_check
      _
    $region19: #{tpu_custom_call.1} parent=1 // pred_check_branch
      %53 = sbr.rel (0) target = $region21
    $region20: #{tpu_custom_call.1} parent=1 // pred_region
      %55 = dma.done [#allocation6], 32
    $region21: #{tpu_custom_call.1} parent=1 // pred_fallthru
      _
    // Predicated region
    $region22: #{tpu_custom_call.1} parent=1 // pred_check
      _
    $region23: #{tpu_custom_call.1} parent=1 // pred_check_branch
      %57 = sbr.rel (0) target = $region25
    $region24: #{tpu_custom_call.1} parent=1 // pred_region
      %59 = dma.done [#allocation6], 32
    $region25: #{tpu_custom_call.1} parent=1 // pred_fallthru
      _
    %v62 = vld [vmem:[#allocation2] sm:$0x3]
    %v63 = vld [vmem:[#allocation2 + $0x2] sm:$0x3]
    %v64 = vld [vmem:[#allocation5] sm:$0x3]
    %v65 = vadd.f32 %v62, %v64
    %v66 = vadd.f32 %v63, %v64
    %v67 = vld [vmem:[#allocation7] sm:$0x1]
    %v68 = vld [vmem:[#allocation7 + $0x1] sm:$0x1]
    %vm69 = vnez %v67
    %vm70 = vnez %v68
    %v71 = vsel %vm69, 16843009, 0
    %v72 = vsel %vm70, 16843009, 0
    %v73 = vunpack.c.0.s8 %v71
    %v74 = vunpack.c.0.s8 %v72
    %vm75 = vcmp.ne.s32.totalorder %v73, 0
    %vm76 = vcmp.ne.s32.totalorder %v74, 0
    %v77 = vsel %vm75, 0.0, %v65
    %v78 = vsel %vm76, 0.0, %v66
    %79 = vst [vmem:[#allocation8] sm:$0x3] %v77
    %80 = vst [vmem:[#allocation8 + $0x2] sm:$0x3] %v78
    // Predicated region
    $region26: #{tpu_custom_call.1} parent=1 // pred_check
      _
    $region27: #{tpu_custom_call.1} parent=1 // pred_check_branch
      %82 = sbr.rel (0) target = $region29
    $region28: #{tpu_custom_call.1} parent=1 // pred_region
      %84 = vsyncadd [#allocation4], 0
      %s85 = sshll.u32 [#allocation8], 4
      %s86 = int_to_ptr.vmem [resolvable:$true] %s85
      %s87 = sshll.u32 %s3, 4
      %s88 = int_to_ptr.hbm [resolvable:$true] %s87
      %93 = dma.vmem_to_hbm [thread:$0]  %s86, 64, %s88, [#allocation4], 32, 32, 2
    $region29: #{tpu_custom_call.1} parent=1 // pred_fallthru
      _
    // Predicated region
    $region30: #{tpu_custom_call.1} parent=1 // pred_check
      _
    $region31: #{tpu_custom_call.1} parent=1 // pred_check_branch
      %95 = sbr.rel (0) target = $region33
    $region32: #{tpu_custom_call.1} parent=1 // pred_region
      %97 = dma.done [#allocation4], 64
    $region33: #{tpu_custom_call.1} parent=1 // pred_fallthru
      _
    %98 = vsyncpa [#allocation3], 1
    %99 = vsyncpa [#allocation6], 1
    %100 = vsyncpa [#allocation4], 1

</llo_original>
